<compile_context>
chip_gen: v7x
topology: tpu7x:2x2x1
jax: 0.10.0
libtpu: 0.0.40
codegen_flags: <defaults>
</compile_context>

<pallas_src>
import functools

import jax
import jax.numpy as jnp
from jax.experimental import pallas as pl
from jax.experimental.pallas import tpu as pltpu

IN_F, HIDDEN, OUT_F = 16, 64, 8
_MIN_SPLIT = 1024  # batch size above which we force >=2 grid steps (v7x megacore)


def _round_up(v, m):
    return ((v + m - 1) // m) * m


def mlp_kernel(x_ref, w_ref, b_ref, o_ref):
    # x_ref: (TB, IN_F) bf16 raw input tile (batch-padded only)
    # w_ref: (4, HIDDEN, HIDDEN) bf16 packed weights (fc1 K-padded 16->64 with
    #        zeros - unused since we slice; fc4 N-padded 8->64 with zeros)
    # b_ref: (4, 1, HIDDEN) f32 packed biases (fc4 N-padded with zeros)
    # o_ref: (TB, OUT_F) f32 softmax output tile
    x = x_ref[...]                                   # bf16, no in-kernel cast

    # fc1: contract only the 16 real feature rows of the resident slab.
    h = jnp.dot(x, w_ref[0, :IN_F, :], preferred_element_type=jnp.float32) + b_ref[0]
    h = jnp.maximum(h, 0.0)
    h = jnp.dot(h.astype(jnp.bfloat16), w_ref[1],
                preferred_element_type=jnp.float32) + b_ref[1]
    h = jnp.maximum(h, 0.0)
    h = jnp.dot(h.astype(jnp.bfloat16), w_ref[2],
                preferred_element_type=jnp.float32) + b_ref[2]
    h = jnp.maximum(h, 0.0)
    logits = jnp.dot(h.astype(jnp.bfloat16), w_ref[3],
                     preferred_element_type=jnp.float32) + b_ref[3]

    # Drop the zero-padded output columns, then numerically-stable softmax (f32).
    logits = logits[:, :OUT_F]
    m = jnp.max(logits, axis=1, keepdims=True)
    e = jnp.exp(logits - m)
    denom = jnp.sum(e, axis=1, keepdims=True)
    o_ref[...] = (e * pl.reciprocal(denom, approx=True)).astype(o_ref.dtype)


def pack_params(params):
    """Pack 4 (w, b) pairs into one bf16 weight slab + one f32 bias slab.

    Call ONCE per parameter set and reuse the result across forward calls.
    """
    (w1, b1), (w2, b2), (w3, b3), (w4, b4) = params
    W = jnp.zeros((4, HIDDEN, HIDDEN), jnp.float32)
    W = W.at[0, :IN_F, :].set(w1)          # K-pad fc1: 16 -> 64 (zeros, unused)
    W = W.at[1].set(w2)
    W = W.at[2].set(w3)
    W = W.at[3, :, :OUT_F].set(w4)         # N-pad fc4: 8 -> 64 (zeros)
    Bv = jnp.zeros((4, 1, HIDDEN), jnp.float32)
    Bv = Bv.at[0, 0].set(b1.reshape(-1))
    Bv = Bv.at[1, 0].set(b2.reshape(-1))
    Bv = Bv.at[2, 0].set(b3.reshape(-1))
    Bv = Bv.at[3, 0, :OUT_F].set(b4.reshape(-1))
    return W.astype(jnp.bfloat16), Bv


@functools.partial(jax.jit, static_argnames=("tb",))
def neural_net_forward(x, packed, *, tb=2048):
    """Forward pass matching the PyTorch NeuralNet.

    x: (B, 16) float array.  packed: output of pack_params.  Returns (B, 8).
    """
    W, Bv = packed
    B = x.shape[0]

    # Batch-tile selection:
    #  * B >= _MIN_SPLIT: force grid_n >= 2 so the "parallel" batch axis can
    #    shard across both v7x TensorCores; keep TB 128-aligned.
    #  * otherwise: single tile if it fits in tb, else 128-aligned tb tiles.
    tb_aligned = _round_up(max(tb, 8), 128)
    if B >= _MIN_SPLIT:
        TB = min(tb_aligned, _round_up(pl.cdiv(B, 2), 128))
    else:
        TB = min(_round_up(B, 8), tb_aligned)
    grid_n = pl.cdiv(B, TB)
    B_pad = grid_n * TB

    # Cast once to bf16 (weights are bf16 anyway) and pad only the batch dim.
    # Padded rows produce valid (discarded) softmax rows.
    x_bf = x.astype(jnp.bfloat16)
    if B_pad != B:
        x_bf = jnp.pad(x_bf, ((0, B_pad - B), (0, 0)))

    out = pl.pallas_call(
        mlp_kernel,
        out_shape=jax.ShapeDtypeStruct((B_pad, OUT_F), jnp.float32),
        grid=(grid_n,),
        in_specs=[
            pl.BlockSpec((TB, IN_F), lambda i: (i, 0)),              # x tiles (bf16, raw width)
            pl.BlockSpec((4, HIDDEN, HIDDEN), lambda i: (0, 0, 0)),  # weights (VMEM-resident)
            pl.BlockSpec((4, 1, HIDDEN), lambda i: (0, 0, 0)),       # biases  (VMEM-resident)
        ],
        out_specs=pl.BlockSpec((TB, OUT_F), lambda i: (i, 0)),
        compiler_params=pltpu.CompilerParams(
            dimension_semantics=("parallel",)),
    )(x_bf, W, Bv)
    return out[:B]


def init_linear(key, in_features, out_features):
    # Deterministic init mimicking PyTorch default (uniform +/- 1/sqrt(fan_in)).
    kw, kb = jax.random.split(key)
    bound = 1.0 / (in_features ** 0.5)
    w = jax.random.uniform(kw, (in_features, out_features), jnp.float32,
                           minval=-bound, maxval=bound)
    b = jax.random.uniform(kb, (out_features,), jnp.float32,
                           minval=-bound, maxval=bound)
    return w, b


def ref_forward(x, params):
    h = x
    for i, (w, b) in enumerate(params):
        h = h @ w + b.reshape(1, -1)
        if i < 3:
            h = jnp.maximum(h, 0.0)
    return jax.nn.softmax(h, axis=1)


if __name__ == "__main__":
    key = jax.random.PRNGKey(0)
    k_x, k1, k2, k3, k4 = jax.random.split(key, 5)

    B = 8
    x = jax.random.normal(k_x, (B, IN_F), jnp.float32)

    params = (
        init_linear(k1, IN_F, HIDDEN),
        init_linear(k2, HIDDEN, HIDDEN),
        init_linear(k3, HIDDEN, HIDDEN),
        init_linear(k4, HIDDEN, OUT_F),
    )
    # Pack the parameter slabs once and reuse across calls (perf feedback #6).
    packed = pack_params(params)
    packed = jax.block_until_ready(packed)

    # Small-batch path (single grid point, whole problem in VMEM).
    out = neural_net_forward(x, packed)
    jax.block_until_ready(out)
    assert out.shape == (B, OUT_F)
    row_sums = jnp.sum(out, axis=1)
    assert bool(jnp.all(jnp.abs(row_sums - 1.0) < 1e-2))
    ref = ref_forward(x, params)
    assert bool(jnp.all(jnp.abs(out - ref) < 5e-2))  # bf16 weights -> loose tol

    # Exercise the batch-tiled path: multiple grid points + ragged last tile.
    B2 = 200
    x2 = jax.random.normal(jax.random.PRNGKey(1), (B2, IN_F), jnp.float32)
    out2 = neural_net_forward(x2, packed, tb=128)
    jax.block_until_ready(out2)
    assert out2.shape == (B2, OUT_F)
    assert bool(jnp.all(jnp.abs(jnp.sum(out2, axis=1) - 1.0) < 1e-2))
    ref2 = ref_forward(x2, params)
    assert bool(jnp.all(jnp.abs(out2 - ref2) < 5e-2))

    print("KERNEL_OK")
</pallas_src>

<mosaic_0001>
module attributes {stable_mosaic.version = 11 : i64} {
  func.func @mlp_kernel(%arg0: i32, %arg1: memref<8x16xbf16, #tpu.memory_space<vmem>>, %arg2: memref<4x64x64xbf16, #tpu.memory_space<vmem>>, %arg3: memref<4x1x64xf32, #tpu.memory_space<vmem>>, %arg4: memref<8x8xf32, #tpu.memory_space<vmem>>) attributes {dimension_semantics = [#tpu.dimension_semantics<parallel>], iteration_bounds = array<i64: 1>, scalar_prefetch = 0 : i64, scratch_operands = 0 : i64, tpu.core_type = #tpu.core_type<tc>, window_params = [{transform_indices = @transform_0, window_bounds = array<i64: 8, 16>}, {pipeline_mode = #tpu.pipeline_mode<synchronous>, transform_indices = @transform_1, window_bounds = array<i64: 4, 64, 64>}, {pipeline_mode = #tpu.pipeline_mode<synchronous>, transform_indices = @transform_2, window_bounds = array<i64: 4, 1, 64>}, {transform_indices = @transform_3, window_bounds = array<i64: 8, 8>}]} {
    %c0 = arith.constant 0 : index
    %c0_0 = arith.constant 0 : index
    %0 = vector.load %arg1[%c0, %c0_0] : memref<8x16xbf16, #tpu.memory_space<vmem>>, vector<8x16xbf16>
    %c0_1 = arith.constant 0 : index
    %c0_2 = arith.constant 0 : index
    %c0_3 = arith.constant 0 : index
    %1 = vector.load %arg2[%c0_1, %c0_2, %c0_3] : memref<4x64x64xbf16, #tpu.memory_space<vmem>>, vector<1x16x64xbf16>
    %2 = vector.shape_cast %1 : vector<1x16x64xbf16> to vector<16x64xbf16>
    %cst = arith.constant dense<0.000000e+00> : vector<8x64xf32>
    %3 = tpu.matmul %0, %2, %cst {dimension_numbers = #tpu.dot_dimension_numbers<[1], [0], [0], [1], [0, 0, 1, 1], [], []>} : vector<8x16xbf16>, vector<16x64xbf16>, vector<8x64xf32> -> vector<8x64xf32>
    %c0_4 = arith.constant 0 : index
    %c0_5 = arith.constant 0 : index
    %c0_6 = arith.constant 0 : index
    %4 = vector.load %arg3[%c0_4, %c0_5, %c0_6] : memref<4x1x64xf32, #tpu.memory_space<vmem>>, vector<1x1x64xf32>
    %5 = vector.shape_cast %4 : vector<1x1x64xf32> to vector<1x64xf32>
    %6 = vector.broadcast %5 : vector<1x64xf32> to vector<8x64xf32>
    %7 = arith.addf %3, %6 : vector<8x64xf32>
    %cst_7 = arith.constant 0.000000e+00 : f32
    %8 = vector.broadcast %cst_7 : f32 to vector<8x64xf32>
    %9 = arith.maximumf %7, %8 : vector<8x64xf32>
    %10 = arith.truncf %9 : vector<8x64xf32> to vector<8x64xbf16>
    %c1 = arith.constant 1 : index
    %c0_8 = arith.constant 0 : index
    %c0_9 = arith.constant 0 : index
    %11 = vector.load %arg2[%c1, %c0_8, %c0_9] : memref<4x64x64xbf16, #tpu.memory_space<vmem>>, vector<1x64x64xbf16>
    %12 = vector.shape_cast %11 : vector<1x64x64xbf16> to vector<64x64xbf16>
    %cst_10 = arith.constant dense<0.000000e+00> : vector<8x64xf32>
    %13 = tpu.matmul %10, %12, %cst_10 {dimension_numbers = #tpu.dot_dimension_numbers<[1], [0], [0], [1], [0, 0, 1, 1], [], []>} : vector<8x64xbf16>, vector<64x64xbf16>, vector<8x64xf32> -> vector<8x64xf32>
    %c1_11 = arith.constant 1 : index
    %c0_12 = arith.constant 0 : index
    %c0_13 = arith.constant 0 : index
    %14 = vector.load %arg3[%c1_11, %c0_12, %c0_13] : memref<4x1x64xf32, #tpu.memory_space<vmem>>, vector<1x1x64xf32>
    %15 = vector.shape_cast %14 : vector<1x1x64xf32> to vector<1x64xf32>
    %16 = vector.broadcast %15 : vector<1x64xf32> to vector<8x64xf32>
    %17 = arith.addf %13, %16 : vector<8x64xf32>
    %cst_14 = arith.constant 0.000000e+00 : f32
    %18 = vector.broadcast %cst_14 : f32 to vector<8x64xf32>
    %19 = arith.maximumf %17, %18 : vector<8x64xf32>
    %20 = arith.truncf %19 : vector<8x64xf32> to vector<8x64xbf16>
    %c2 = arith.constant 2 : index
    %c0_15 = arith.constant 0 : index
    %c0_16 = arith.constant 0 : index
    %21 = vector.load %arg2[%c2, %c0_15, %c0_16] : memref<4x64x64xbf16, #tpu.memory_space<vmem>>, vector<1x64x64xbf16>
    %22 = vector.shape_cast %21 : vector<1x64x64xbf16> to vector<64x64xbf16>
    %cst_17 = arith.constant dense<0.000000e+00> : vector<8x64xf32>
    %23 = tpu.matmul %20, %22, %cst_17 {dimension_numbers = #tpu.dot_dimension_numbers<[1], [0], [0], [1], [0, 0, 1, 1], [], []>} : vector<8x64xbf16>, vector<64x64xbf16>, vector<8x64xf32> -> vector<8x64xf32>
    %c2_18 = arith.constant 2 : index
    %c0_19 = arith.constant 0 : index
    %c0_20 = arith.constant 0 : index
    %24 = vector.load %arg3[%c2_18, %c0_19, %c0_20] : memref<4x1x64xf32, #tpu.memory_space<vmem>>, vector<1x1x64xf32>
    %25 = vector.shape_cast %24 : vector<1x1x64xf32> to vector<1x64xf32>
    %26 = vector.broadcast %25 : vector<1x64xf32> to vector<8x64xf32>
    %27 = arith.addf %23, %26 : vector<8x64xf32>
    %cst_21 = arith.constant 0.000000e+00 : f32
    %28 = vector.broadcast %cst_21 : f32 to vector<8x64xf32>
    %29 = arith.maximumf %27, %28 : vector<8x64xf32>
    %30 = arith.truncf %29 : vector<8x64xf32> to vector<8x64xbf16>
    %c3 = arith.constant 3 : index
    %c0_22 = arith.constant 0 : index
    %c0_23 = arith.constant 0 : index
    %31 = vector.load %arg2[%c3, %c0_22, %c0_23] : memref<4x64x64xbf16, #tpu.memory_space<vmem>>, vector<1x64x64xbf16>
    %32 = vector.shape_cast %31 : vector<1x64x64xbf16> to vector<64x64xbf16>
    %cst_24 = arith.constant dense<0.000000e+00> : vector<8x64xf32>
    %33 = tpu.matmul %30, %32, %cst_24 {dimension_numbers = #tpu.dot_dimension_numbers<[1], [0], [0], [1], [0, 0, 1, 1], [], []>} : vector<8x64xbf16>, vector<64x64xbf16>, vector<8x64xf32> -> vector<8x64xf32>
    %c3_25 = arith.constant 3 : index
    %c0_26 = arith.constant 0 : index
    %c0_27 = arith.constant 0 : index
    %34 = vector.load %arg3[%c3_25, %c0_26, %c0_27] : memref<4x1x64xf32, #tpu.memory_space<vmem>>, vector<1x1x64xf32>
    %35 = vector.shape_cast %34 : vector<1x1x64xf32> to vector<1x64xf32>
    %36 = vector.broadcast %35 : vector<1x64xf32> to vector<8x64xf32>
    %37 = arith.addf %33, %36 : vector<8x64xf32>
    %38 = vector.extract_strided_slice %37 {offsets = [0, 0], sizes = [8, 8], strides = [1, 1]} : vector<8x64xf32> to vector<8x8xf32>
    %cst_28 = arith.constant dense<0xFF800000> : vector<8xf32>
    %39 = vector.multi_reduction <maximumf>, %38, %cst_28 [1] : vector<8x8xf32> to vector<8xf32>
    %40 = vector.shape_cast %39 : vector<8xf32> to vector<8x1xf32>
    %41 = vector.broadcast %40 : vector<8x1xf32> to vector<8x8xf32>
    %42 = arith.subf %38, %41 : vector<8x8xf32>
    %43 = math.exp %42 : vector<8x8xf32>
    %cst_29 = arith.constant dense<0.000000e+00> : vector<8xf32>
    %44 = vector.multi_reduction <add>, %43, %cst_29 [1] : vector<8x8xf32> to vector<8xf32>
    %45 = vector.shape_cast %44 : vector<8xf32> to vector<8x1xf32>
    %46 = tpu.reciprocal %45 {approx = true} : vector<8x1xf32> -> vector<8x1xf32>
    %47 = vector.broadcast %46 : vector<8x1xf32> to vector<8x8xf32>
    %48 = arith.mulf %43, %47 : vector<8x8xf32>
    %c0_30 = arith.constant 0 : index
    %c0_31 = arith.constant 0 : index
    %49 = vector.load %arg4[%c0_30, %c0_31] : memref<8x8xf32, #tpu.memory_space<vmem>>, vector<8x8xf32>
    tpu.vector_store %arg4[%c0_30, %c0_31], %48 {strides = array<i32>} : memref<8x8xf32, #tpu.memory_space<vmem>>, vector<8x8xf32>,
    return
  }
  func.func @transform_0(%arg0: i32) -> (i32, i32) {
    %c0_i32 = arith.constant 0 : i32
    %c0_i32_0 = arith.constant 0 : i32
    return %arg0, %c0_i32 : i32, i32
  }
  func.func @transform_1(%arg0: i32) -> (i32, i32, i32) {
    %c0_i32 = arith.constant 0 : i32
    %c0_i32_0 = arith.constant 0 : i32
    %c0_i32_1 = arith.constant 0 : i32
    %c0_i32_2 = arith.constant 0 : i32
    return %c0_i32, %c0_i32_0, %c0_i32_1 : i32, i32, i32
  }
  func.func @transform_2(%arg0: i32) -> (i32, i32, i32) {
    %c0_i32 = arith.constant 0 : i32
    %c0_i32_0 = arith.constant 0 : i32
    %c0_i32_1 = arith.constant 0 : i32
    %c0_i32_2 = arith.constant 0 : i32
    return %c0_i32, %c0_i32_0, %c0_i32_1 : i32, i32, i32
  }
  func.func @transform_3(%arg0: i32) -> (i32, i32) {
    %c0_i32 = arith.constant 0 : i32
    %c0_i32_0 = arith.constant 0 : i32
    return %arg0, %c0_i32 : i32, i32
  }
}

</mosaic_0001>

<llo_original>
// kernel: neural_net_forward.1
$region0: #{neural_net_forward.1}
  #allocation0 [shape = 'u32[]', space=smem, size = 0x4, offset = 0x4, fixed_abs, tag = 'smem constant byte address 0x4 - core index']
  #allocation1 [shape = 'u32[144,128]{1,0:T(1,128)}', space=vmem, size = 0x12000, scoped, tag = 'internal scratch']
  %s0 = inlined_call_operand.vmem [shape: bf16[8,16], index: 0, kind: input, shape index: {}]
  %s1 = inlined_call_operand.hbm [shape: bf16[4,64,64], index: 1, kind: input, shape index: {}]
  %s2 = inlined_call_operand.vmem [shape: f32[4,1,64], index: 2, kind: input, shape index: {}]
  %s3 = inlined_call_operand.hbm [shape: f32[8,8], index: 3, kind: output, shape index: {}]
  %s4 = sld [smem:[#allocation0]]
  $region26: #{neural_net_forward.1} parent=0
    _
  %s6 = ssub.s32 1, %s4
  %s7 = scalar_select 0, %s6, %s4
  $region1: #{neural_net_forward.1} parent=0
    #allocation2 [shape = 'u8[65536]{0}', space=vmem, size = 0x10000, scoped, tag = 'input window, operand 1, single buffered']
    #allocation3 [shape = 's32[1]{0}', space=sflag, size = 0x4, scoped, tag = 'scoped memory for neural_net_forward.1']
    #allocation4 [shape = 's32[1]{0}', space=sflag, size = 0x4, scoped, tag = 'scoped memory for neural_net_forward.1']
    #allocation5 [shape = 'u8[4096]{0}', space=vmem, size = 0x1000, scoped, tag = 'output window, operand 0, single buffered']
    %8 = vsyncpa [#allocation3], 0
    %9 = vsyncpa [#allocation4], 0
    // Predicated region
    $region2: #{neural_net_forward.1} parent=1 // pred_check
      _
    $region3: #{neural_net_forward.1} parent=1 // pred_check_branch
      %11 = sbr.rel (0) target = $region5
    $region4: #{neural_net_forward.1} parent=1 // pred_region
      _
    $region5: #{neural_net_forward.1} parent=1 // pred_fallthru
      _
    // Predicated region
    $region6: #{neural_net_forward.1} parent=1 // pred_check
      _
    $region7: #{neural_net_forward.1} parent=1 // pred_check_branch
      %13 = sbr.rel (0) target = $region9
    $region8: #{neural_net_forward.1} parent=1 // pred_region
      %s15 = ssub.s32 2048, 2048
      %16 = vsyncadd [#allocation3], %s15
      %s17 = sshll.u32 [#allocation2], 4
      %s18 = int_to_ptr.vmem [resolvable:$true] %s17
      %23 = dma.hbm_to_vmem [thread:$0]  %s1, 2048, %s18, [#allocation3], 64, 64, 4
    $region9: #{neural_net_forward.1} parent=1 // pred_fallthru
      _
    // Predicated region
    $region10: #{neural_net_forward.1} parent=1 // pred_check
      _
    $region11: #{neural_net_forward.1} parent=1 // pred_check_branch
      %25 = sbr.rel (0) target = $region13
    $region12: #{neural_net_forward.1} parent=1 // pred_region
      _
    $region13: #{neural_net_forward.1} parent=1 // pred_fallthru
      _
    // Predicated region
    $region14: #{neural_net_forward.1} parent=1 // pred_check
      _
    $region15: #{neural_net_forward.1} parent=1 // pred_check_branch
      %27 = sbr.rel (0) target = $region17
    $region16: #{neural_net_forward.1} parent=1 // pred_region
      %28 = dma.done [#allocation3], 2048
    $region17: #{neural_net_forward.1} parent=1 // pred_fallthru
      _
    %v30 = vld [vmem:[%s0] sm:$0xf]
    %v31 = vld [vmem:[#allocation2] sm:$0xf]
    %v32 = vld [vmem:[#allocation2 + $0x4] sm:$0xf]
    %v33 = vld [vmem:[%s2] sm:$0x1]
    %v35 = vlaneseq
    %v36 = vshrl.u32 %v35, 7
    %v37 = vsub.s32 0, %v36
    %v38 = vrot.slane %v33, %v37
    %v42 = vunpack.c.l.b16 %v31
    %v43 = vunpack.c.l.b16 %v32
    %v44 = vpack.c.b16 %v43, %v42
    %vm46 = vcmask 130048
    %v48 = vsel %vm46, %v30, 0
    %50 = vmatprep.subr.bf16.mxu0 0
    %51 = vmatpush1.bf16.msra.mxu0 %v44
    %52 = vmatprep.subr.bf16.mxu0 0
    %53 = vmatpush1.bf16.msra.mxu0 0
    %54 = vmatprep.subr.bf16.mxu0 0
    %55 = vmatpush1.bf16.msra.mxu0 0
    %56 = vmatprep.subr.bf16.mxu0 0
    %57 = vmatpush1.bf16.msra.mxu0 0
    %58 = vmatprep.subr.bf16.mxu0 0
    %59 = vmatpush1.bf16.msra.mxu0 0
    %60 = vmatprep.subr.bf16.mxu0 0
    %61 = vmatpush1.bf16.msra.mxu0 0
    %62 = vmatprep.subr.bf16.mxu0 0
    %63 = vmatpush1.bf16.msra.mxu0 0
    %64 = vmatprep.subr.bf16.mxu0 0
    %65 = vmatpush1.bf16.msra.mxu0 0
    %66 = vmatprep.subr.bf16.mxu0 0
    %67 = vmatpush1.bf16.msra.mxu0 0
    %68 = vmatprep.subr.bf16.mxu0 0
    %69 = vmatpush1.bf16.msra.mxu0 0
    %70 = vmatprep.subr.bf16.mxu0 0
    %71 = vmatpush1.bf16.msra.mxu0 0
    %72 = vmatprep.subr.bf16.mxu0 0
    %73 = vmatpush1.bf16.msra.mxu0 0
    %74 = vmatprep.subr.bf16.mxu0 0
    %75 = vmatpush1.bf16.msra.mxu0 0
    %76 = vmatprep.subr.bf16.mxu0 0
    %77 = vmatpush1.bf16.msra.mxu0 0
    %78 = vmatprep.subr.bf16.mxu0 0
    %79 = vmatpush1.bf16.msra.mxu0 0
    %80 = vmatprep.subr.bf16.mxu0 0
    %81 = vmatpush1.bf16.msra.mxu0 0
    %82 = vmatprep.mubr.bf16.mxu0 0
    %83 = vmatmul.mubr.bf16.gmra.mrb[0].mxu0 %v48
    %v84 = vpop.f32.mrb[0].mxu0
    %v85 = vadd.f32 %v38, %v84
    %v86 = vpop.f32.mrb[0].mxu0
    %v87 = vpop.f32.mrb[0].mxu0
    %v88 = vpop.f32.mrb[0].mxu0
    %89 = vdwg.mxu0
    %v90 = vmax.f32 %v85, 0.0
    %v91 = vpack.c.bf16 %v90, %v90
    %s92 = scalar_lea.vmem [#allocation2], 32
    %v93 = vld [vmem:[%s92] sm:$0xf]
    %v94 = vld [vmem:[%s92 + $0x4] sm:$0xf]
    %v95 = vld [vmem:[%s92 + $0x8] sm:$0xf]
    %v96 = vld [vmem:[%s92 + $0xc] sm:$0xf]
    %v97 = vld [vmem:[%s92 + $0x10] sm:$0xf]
    %v98 = vld [vmem:[%s92 + $0x14] sm:$0xf]
    %v99 = vld [vmem:[%s92 + $0x18] sm:$0xf]
    %v100 = vld [vmem:[%s92 + $0x1c] sm:$0xf]
    %s101 = scalar_lea.vmem %s2, 1
    %v102 = vld [vmem:[%s101] sm:$0x1]
    %v104 = vlaneseq
    %v105 = vshrl.u32 %v104, 7
    %v106 = vsub.s32 0, %v105
    %v107 = vrot.slane %v102, %v106
    %v117 = vunpack.c.l.b16 %v93
    %v118 = vunpack.c.l.b16 %v94
    %v119 = vunpack.c.l.b16 %v95
    %v120 = vunpack.c.l.b16 %v96
    %v121 = vunpack.c.l.b16 %v97
    %v122 = vunpack.c.l.b16 %v98
    %v123 = vunpack.c.l.b16 %v99
    %v124 = vunpack.c.l.b16 %v100
    %v125 = vpack.c.b16 %v118, %v117
    %v126 = vpack.c.b16 %v120, %v119
    %v127 = vpack.c.b16 %v122, %v121
    %v128 = vpack.c.b16 %v124, %v123
    %vm133 = vcmask 523264
    %v135 = vsel %vm133, %v91, 0
    %137 = vmatprep.subr.bf16.mxu0 0
    %138 = vmatpush1.bf16.msra.mxu0 %v125
    %139 = vmatprep.subr.bf16.mxu0 0
    %140 = vmatpush1.bf16.msra.mxu0 %v126
    %141 = vmatprep.subr.bf16.mxu0 0
    %142 = vmatpush1.bf16.msra.mxu0 %v127
    %143 = vmatprep.subr.bf16.mxu0 0
    %144 = vmatpush1.bf16.msra.mxu0 %v128
    %145 = vmatprep.subr.bf16.mxu0 0
    %146 = vmatpush1.bf16.msra.mxu0 0
    %147 = vmatprep.subr.bf16.mxu0 0
    %148 = vmatpush1.bf16.msra.mxu0 0
    %149 = vmatprep.subr.bf16.mxu0 0
    %150 = vmatpush1.bf16.msra.mxu0 0
    %151 = vmatprep.subr.bf16.mxu0 0
    %152 = vmatpush1.bf16.msra.mxu0 0
    %153 = vmatprep.subr.bf16.mxu0 0
    %154 = vmatpush1.bf16.msra.mxu0 0
    %155 = vmatprep.subr.bf16.mxu0 0
    %156 = vmatpush1.bf16.msra.mxu0 0
    %157 = vmatprep.subr.bf16.mxu0 0
    %158 = vmatpush1.bf16.msra.mxu0 0
    %159 = vmatprep.subr.bf16.mxu0 0
    %160 = vmatpush1.bf16.msra.mxu0 0
    %161 = vmatprep.subr.bf16.mxu0 0
    %162 = vmatpush1.bf16.msra.mxu0 0
    %163 = vmatprep.subr.bf16.mxu0 0
    %164 = vmatpush1.bf16.msra.mxu0 0
    %165 = vmatprep.subr.bf16.mxu0 0
    %166 = vmatpush1.bf16.msra.mxu0 0
    %167 = vmatprep.subr.bf16.mxu0 0
    %168 = vmatpush1.bf16.msra.mxu0 0
    %169 = vmatprep.mubr.bf16.mxu0 0
    %170 = vmatmul.mubr.bf16.gmra.mrb[0].mxu0 %v135
    %v171 = vpop.f32.mrb[0].mxu0
    %v172 = vadd.f32 %v107, %v171
    %v173 = vpop.f32.mrb[0].mxu0
    %v174 = vpop.f32.mrb[0].mxu0
    %v175 = vpop.f32.mrb[0].mxu0
    %176 = vdwg.mxu0
    %v177 = vmax.f32 %v172, 0.0
    %v178 = vpack.c.bf16 %v177, %v177
    %s179 = scalar_lea.vmem [#allocation2], 64
    %v180 = vld [vmem:[%s179] sm:$0xf]
    %v181 = vld [vmem:[%s179 + $0x4] sm:$0xf]
    %v182 = vld [vmem:[%s179 + $0x8] sm:$0xf]
    %v183 = vld [vmem:[%s179 + $0xc] sm:$0xf]
    %v184 = vld [vmem:[%s179 + $0x10] sm:$0xf]
    %v185 = vld [vmem:[%s179 + $0x14] sm:$0xf]
    %v186 = vld [vmem:[%s179 + $0x18] sm:$0xf]
    %v187 = vld [vmem:[%s179 + $0x1c] sm:$0xf]
    %s188 = scalar_lea.vmem %s2, 2
    %v189 = vld [vmem:[%s188] sm:$0x1]
    %v191 = vlaneseq
    %v192 = vshrl.u32 %v191, 7
    %v193 = vsub.s32 0, %v192
    %v194 = vrot.slane %v189, %v193
    %v204 = vunpack.c.l.b16 %v180
    %v205 = vunpack.c.l.b16 %v181
    %v206 = vunpack.c.l.b16 %v182
    %v207 = vunpack.c.l.b16 %v183
    %v208 = vunpack.c.l.b16 %v184
    %v209 = vunpack.c.l.b16 %v185
    %v210 = vunpack.c.l.b16 %v186
    %v211 = vunpack.c.l.b16 %v187
    %v212 = vpack.c.b16 %v205, %v204
    %v213 = vpack.c.b16 %v207, %v206
    %v214 = vpack.c.b16 %v209, %v208
    %v215 = vpack.c.b16 %v211, %v210
    %v221 = vsel %vm133, %v178, 0
    %223 = vmatprep.subr.bf16.mxu0 0
    %224 = vmatpush1.bf16.msra.mxu0 %v212
    %225 = vmatprep.subr.bf16.mxu0 0
    %226 = vmatpush1.bf16.msra.mxu0 %v213
    %227 = vmatprep.subr.bf16.mxu0 0
    %228 = vmatpush1.bf16.msra.mxu0 %v214
    %229 = vmatprep.subr.bf16.mxu0 0
    %230 = vmatpush1.bf16.msra.mxu0 %v215
    %231 = vmatprep.subr.bf16.mxu0 0
    %232 = vmatpush1.bf16.msra.mxu0 0
    %233 = vmatprep.subr.bf16.mxu0 0
    %234 = vmatpush1.bf16.msra.mxu0 0
    %235 = vmatprep.subr.bf16.mxu0 0
    %236 = vmatpush1.bf16.msra.mxu0 0
    %237 = vmatprep.subr.bf16.mxu0 0
    %238 = vmatpush1.bf16.msra.mxu0 0
    %239 = vmatprep.subr.bf16.mxu0 0
    %240 = vmatpush1.bf16.msra.mxu0 0
    %241 = vmatprep.subr.bf16.mxu0 0
    %242 = vmatpush1.bf16.msra.mxu0 0
    %243 = vmatprep.subr.bf16.mxu0 0
    %244 = vmatpush1.bf16.msra.mxu0 0
    %245 = vmatprep.subr.bf16.mxu0 0
    %246 = vmatpush1.bf16.msra.mxu0 0
    %247 = vmatprep.subr.bf16.mxu0 0
    %248 = vmatpush1.bf16.msra.mxu0 0
    %249 = vmatprep.subr.bf16.mxu0 0
    %250 = vmatpush1.bf16.msra.mxu0 0
    %251 = vmatprep.subr.bf16.mxu0 0
    %252 = vmatpush1.bf16.msra.mxu0 0
    %253 = vmatprep.subr.bf16.mxu0 0
    %254 = vmatpush1.bf16.msra.mxu0 0
    %255 = vmatprep.mubr.bf16.mxu0 0
    %256 = vmatmul.mubr.bf16.gmra.mrb[0].mxu0 %v221
    %v257 = vpop.f32.mrb[0].mxu0
    %v258 = vadd.f32 %v194, %v257
    %v259 = vpop.f32.mrb[0].mxu0
    %v260 = vpop.f32.mrb[0].mxu0
    %v261 = vpop.f32.mrb[0].mxu0
    %262 = vdwg.mxu0
    %v263 = vmax.f32 %v258, 0.0
    %v264 = vpack.c.bf16 %v263, %v263
    %s265 = scalar_lea.vmem [#allocation2], 96
    %v266 = vld [vmem:[%s265] sm:$0xf]
    %v267 = vld [vmem:[%s265 + $0x4] sm:$0xf]
    %v268 = vld [vmem:[%s265 + $0x8] sm:$0xf]
    %v269 = vld [vmem:[%s265 + $0xc] sm:$0xf]
    %v270 = vld [vmem:[%s265 + $0x10] sm:$0xf]
    %v271 = vld [vmem:[%s265 + $0x14] sm:$0xf]
    %v272 = vld [vmem:[%s265 + $0x18] sm:$0xf]
    %v273 = vld [vmem:[%s265 + $0x1c] sm:$0xf]
    %s274 = scalar_lea.vmem %s2, 3
    %v275 = vld [vmem:[%s274] sm:$0x1]
    %v277 = vlaneseq
    %v278 = vshrl.u32 %v277, 7
    %v279 = vsub.s32 0, %v278
    %v280 = vrot.slane %v275, %v279
    %v290 = vunpack.c.l.b16 %v266
    %v291 = vunpack.c.l.b16 %v267
    %v292 = vunpack.c.l.b16 %v268
    %v293 = vunpack.c.l.b16 %v269
    %v294 = vunpack.c.l.b16 %v270
    %v295 = vunpack.c.l.b16 %v271
    %v296 = vunpack.c.l.b16 %v272
    %v297 = vunpack.c.l.b16 %v273
    %v298 = vpack.c.b16 %v291, %v290
    %v299 = vpack.c.b16 %v293, %v292
    %v300 = vpack.c.b16 %v295, %v294
    %v301 = vpack.c.b16 %v297, %v296
    %v307 = vsel %vm133, %v264, 0
    %309 = vmatprep.subr.bf16.mxu0 0
    %310 = vmatpush1.bf16.msra.mxu0 %v298
    %311 = vmatprep.subr.bf16.mxu0 0
    %312 = vmatpush1.bf16.msra.mxu0 %v299
    %313 = vmatprep.subr.bf16.mxu0 0
    %314 = vmatpush1.bf16.msra.mxu0 %v300
    %315 = vmatprep.subr.bf16.mxu0 0
    %316 = vmatpush1.bf16.msra.mxu0 %v301
    %317 = vmatprep.subr.bf16.mxu0 0
    %318 = vmatpush1.bf16.msra.mxu0 0
    %319 = vmatprep.subr.bf16.mxu0 0
    %320 = vmatpush1.bf16.msra.mxu0 0
    %321 = vmatprep.subr.bf16.mxu0 0
    %322 = vmatpush1.bf16.msra.mxu0 0
    %323 = vmatprep.subr.bf16.mxu0 0
    %324 = vmatpush1.bf16.msra.mxu0 0
    %325 = vmatprep.subr.bf16.mxu0 0
    %326 = vmatpush1.bf16.msra.mxu0 0
    %327 = vmatprep.subr.bf16.mxu0 0
    %328 = vmatpush1.bf16.msra.mxu0 0
    %329 = vmatprep.subr.bf16.mxu0 0
    %330 = vmatpush1.bf16.msra.mxu0 0
    %331 = vmatprep.subr.bf16.mxu0 0
    %332 = vmatpush1.bf16.msra.mxu0 0
    %333 = vmatprep.subr.bf16.mxu0 0
    %334 = vmatpush1.bf16.msra.mxu0 0
    %335 = vmatprep.subr.bf16.mxu0 0
    %336 = vmatpush1.bf16.msra.mxu0 0
    %337 = vmatprep.subr.bf16.mxu0 0
    %338 = vmatpush1.bf16.msra.mxu0 0
    %339 = vmatprep.subr.bf16.mxu0 0
    %340 = vmatpush1.bf16.msra.mxu0 0
    %341 = vmatprep.mubr.bf16.mxu0 0
    %342 = vmatmul.mubr.bf16.gmra.mrb[0].mxu0 %v307
    %v343 = vpop.f32.mrb[0].mxu0
    %v344 = vadd.f32 %v280, %v343
    %v345 = vpop.f32.mrb[0].mxu0
    %v346 = vpop.f32.mrb[0].mxu0
    %v347 = vpop.f32.mrb[0].mxu0
    %348 = vdwg.mxu0
    %vm349 = vcmask 64512
    %v350 = vsel %vm349, %v344, -inf
    %351 = vmax.xlane.f32.xlu0 %v350
    %v352 = vpop.xlane.xlu0 %351
    %v353 = vsub.f32 %v344, %v352
    %v354 = vmul.f32 %v353, 1.442695
    %v355 = vpow.pop %v354
    %v356 = vsel %vm349, %v355, 0.0
    %357 = vadd.xlane.f32.xlu0 %v356
    %v358 = vpop.xlane.xlu0 %357
    %v359 = vrcp.pop %v358
    %v360 = vmul.f32 %v355, %v359
    %361 = vst.msk [vmem:[#allocation5] sm:$0xff] %vm349, %v360
    // Predicated region
    $region18: #{neural_net_forward.1} parent=1 // pred_check
      _
    $region19: #{neural_net_forward.1} parent=1 // pred_check_branch
      %363 = sbr.rel (0) target = $region21
    $region20: #{neural_net_forward.1} parent=1 // pred_region
      %s365 = ssub.s32 128, 128
      %366 = vsyncadd [#allocation4], %s365
      %s368 = sshll.u32 [#allocation5], 4
      %s369 = int_to_ptr.vmem [resolvable:$true] %s368
      %371 = dma.vmem_to_hbm [thread:$0]  %s369, 128, %s3, [#allocation4]
    $region21: #{neural_net_forward.1} parent=1 // pred_fallthru
      _
    // Predicated region
    $region22: #{neural_net_forward.1} parent=1 // pred_check
      _
    $region23: #{neural_net_forward.1} parent=1 // pred_check_branch
      %373 = sbr.rel (0) target = $region25
    $region24: #{neural_net_forward.1} parent=1 // pred_region
      %374 = dma.done [#allocation4], 128
    $region25: #{neural_net_forward.1} parent=1 // pred_fallthru
      _
    %375 = vsyncpa [#allocation3], 1
    %376 = vsyncpa [#allocation4], 1

</llo_original>
